<compile_context>
chip_gen: v5e
topology: v5e:2x2
jax: 0.10.0
libtpu: 0.0.40
codegen_flags: <defaults>
</compile_context>

<pallas_src>
import functools

import jax
import jax.numpy as jnp
from jax.experimental import pallas as pl
from jax.experimental.pallas import tpu as pltpu

_LANE = 128          # TPU lane width; pad output feature dims to this
_TS_TARGET = 2048    # spatial tile (multiple of 128) -> pipelined, VMEM-safe
_TB_TARGET = 8       # batch tile


def _round_up(n, m):
    return ((n + m - 1) // m) * m


# --------------------------- fused per-crop kernel ---------------------------
def _fused_crop_kernel(x_ref, wbb_ref, bbb_ref, whd_ref, bhd_ref, o_ref,
                       acc_ref, *, hw, ts):
    # x_ref:  (TB, C, TS)  crop tile (flattened spatial)
    # wbb_ref:(C, Dp)  bbb_ref:(1, Dp)  whd_ref:(Dp, Kp)  bhd_ref:(1, Kp)
    # o_ref:  (TB, Kp)   acc_ref: (TB, C) f32 pool-sum accumulator
    k = pl.program_id(1)

    @pl.when(k == 0)
    def _():
        acc_ref[...] = jnp.zeros_like(acc_ref)

    x = x_ref[...].astype(jnp.float32)
    if hw % ts:  # mask the ragged last spatial tile (static check)
        start = k * ts
        idx = jax.lax.broadcasted_iota(jnp.int32, x.shape, 2) + start
        x = jnp.where(idx < hw, x, 0.0)
    acc_ref[...] += jnp.sum(x, axis=-1)          # partial global-avg-pool sum

    @pl.when(k == pl.num_programs(1) - 1)
    def _():
        pooled = acc_ref[...] * (1.0 / float(hw))                     # mean
        feat = jnp.dot(pooled, wbb_ref[...],
                       preferred_element_type=jnp.float32)
        feat = jnp.maximum(feat + bbb_ref[...], 0.0)                  # ReLU
        out = jnp.dot(feat, whd_ref[...],
                      preferred_element_type=jnp.float32)
        o_ref[...] = (out + bhd_ref[...]).astype(o_ref.dtype)


def fused_crop_forward(x_nchw, wbb_p, bbb_p, whd_p, bhd_p):
    """One crop: GAP -> linear -> ReLU -> head linear, fused in one call."""
    B, C, H, W = x_nchw.shape
    hw = H * W
    Dp = wbb_p.shape[1]
    Kp = whd_p.shape[1]
    x_flat = x_nchw.reshape(B, C, hw)            # glue reshape (no copy on TPU)

    ts = hw if hw <= _TS_TARGET else _TS_TARGET  # full dim or multiple of 128
    tb = B if B <= _TB_TARGET else _TB_TARGET
    nb = pl.cdiv(B, tb)
    nk = pl.cdiv(hw, ts)

    kernel = functools.partial(_fused_crop_kernel, hw=hw, ts=ts)
    return pl.pallas_call(
        kernel,
        out_shape=jax.ShapeDtypeStruct((B, Kp), jnp.float32),
        grid_spec=pltpu.PrefetchScalarGridSpec(
            num_scalar_prefetch=0,
            grid=(nb, nk),                       # reduction axis last
            in_specs=[
                pl.BlockSpec((tb, C, ts), lambda b, k: (b, 0, k)),
                pl.BlockSpec((C, Dp), lambda b, k: (0, 0)),
                pl.BlockSpec((1, Dp), lambda b, k: (0, 0)),
                pl.BlockSpec((Dp, Kp), lambda b, k: (0, 0)),
                pl.BlockSpec((1, Kp), lambda b, k: (0, 0)),
            ],
            out_specs=pl.BlockSpec((tb, Kp), lambda b, k: (b, 0)),
            scratch_shapes=[pltpu.VMEM((tb, C), jnp.float32)],
        ),
        compiler_params=pltpu.CompilerParams(
            dimension_semantics=("parallel", "arbitrary")),
    )(x_flat, wbb_p, bbb_p, whd_p, bhd_p)


# ----------------------- hoisted weight padding / casts -----------------------
def _pad_params(params):
    """Cast + zero-pad weights/biases to 128-lane output dims (done once)."""
    wbb = params["w_bb"].astype(jnp.float32)
    bbb = params["b_bb"].astype(jnp.float32)
    whd = params["w_head"].astype(jnp.float32)
    bhd = params["b_head"].astype(jnp.float32)
    C, D = wbb.shape
    _, K = whd.shape
    Dp = _round_up(max(D, _LANE), _LANE)
    Kp = _round_up(max(K, _LANE), _LANE)
    wbb_p = jnp.zeros((C, Dp), jnp.float32).at[:, :D].set(wbb)
    bbb_p = jnp.zeros((1, Dp), jnp.float32).at[:, :D].set(bbb)
    whd_p = jnp.zeros((Dp, Kp), jnp.float32).at[:D, :K].set(whd)
    bhd_p = jnp.zeros((1, Kp), jnp.float32).at[:, :K].set(bhd)
    return wbb_p, bbb_p, whd_p, bhd_p, K


# --------------------------- MultiCropWrapper glue ---------------------------
def multi_crop_forward(x, params):
    """Mirrors MultiCropWrapper.forward semantics.

    The reference groups consecutive same-resolution crops and runs the
    backbone per group on the batch-concatenated inputs, then the head on the
    concatenated features.  Both backbone (GAP->linear->ReLU) and head
    (linear) are per-row maps, so running the fused kernel per crop and
    concatenating only the tiny outputs is numerically identical while
    skipping the full-size input concat and the feature HBM round-trip.
    """
    if not isinstance(x, (list, tuple)):
        x = [x]
    wbb_p, bbb_p, whd_p, bhd_p, K = _pad_params(params)   # hoisted out of loop
    outs = [fused_crop_forward(crop, wbb_p, bbb_p, whd_p, bhd_p) for crop in x]
    return jnp.concatenate(outs, axis=0)[:, :K]            # drop lane padding


# --------------------------------- reference ---------------------------------
def _reference(x_list, params):
    feats = []
    for crop in x_list:
        B, C = crop.shape[0], crop.shape[1]
        pooled = jnp.mean(crop.reshape(B, C, -1), axis=-1)
        f = jnp.dot(pooled, params["w_bb"],
                    precision=jax.lax.Precision.HIGHEST) + params["b_bb"]
        feats.append(jnp.maximum(f, 0.0))
    feats = jnp.concatenate(feats, axis=0)
    return jnp.dot(feats, params["w_head"],
                   precision=jax.lax.Precision.HIGHEST) + params["b_head"]


# ----------------------------------- main ------------------------------------
if __name__ == "__main__":
    B, C = 2, 4          # per-crop batch, input channels
    D, K = 32, 16        # backbone feature dim, head output dim

    key = jax.random.PRNGKey(0)
    k1, k2, k3, k4, k5, k6, k7 = jax.random.split(key, 7)

    # multi-crop inputs: 2 "global" crops at 16x16, 1 "local" crop at 8x8 (NCHW)
    crops = [
        jax.random.normal(k1, (B, C, 16, 16), dtype=jnp.float32),
        jax.random.normal(k2, (B, C, 16, 16), dtype=jnp.float32),
        jax.random.normal(k3, (B, C, 8, 8), dtype=jnp.float32),
    ]

    params = {
        "w_bb":   0.1 * jax.random.normal(k4, (C, D), dtype=jnp.float32),
        "b_bb":   0.1 * jax.random.normal(k5, (D,), dtype=jnp.float32),
        "w_head": 0.1 * jax.random.normal(k6, (D, K), dtype=jnp.float32),
        "b_head": 0.1 * jax.random.normal(k7, (K,), dtype=jnp.float32),
    }

    out = multi_crop_forward(crops, params)
    jax.block_until_ready(out)
    assert out.shape == (3 * B, K), out.shape

    ref = _reference(crops, params)
    assert bool(jnp.allclose(out, ref, rtol=1e-3, atol=1e-3)), \
        float(jnp.max(jnp.abs(out - ref)))
    print("KERNEL_OK")
</pallas_src>

<mosaic_0001>
module attributes {stable_mosaic.version = 11 : i64} {
  func.func @_fused_crop_kernel(%arg0: i32, %arg1: i32, %arg2: memref<2x4x256xf32, #tpu.memory_space<vmem>>, %arg3: memref<4x128xf32, #tpu.memory_space<vmem>>, %arg4: memref<1x128xf32, #tpu.memory_space<vmem>>, %arg5: memref<128x128xf32, #tpu.memory_space<vmem>>, %arg6: memref<1x128xf32, #tpu.memory_space<vmem>>, %arg7: memref<2x128xf32, #tpu.memory_space<vmem>>, %arg8: memref<2x4xf32, #tpu.memory_space<vmem>>) attributes {dimension_semantics = [#tpu.dimension_semantics<parallel>, #tpu.dimension_semantics<arbitrary>], iteration_bounds = array<i64: 1, 1>, scalar_prefetch = 0 : i64, scratch_operands = 1 : i64, tpu.core_type = #tpu.core_type<tc>, window_params = [{transform_indices = @transform_0, window_bounds = array<i64: 2, 4, 256>}, {pipeline_mode = #tpu.pipeline_mode<synchronous>, transform_indices = @transform_1, window_bounds = array<i64: 4, 128>}, {pipeline_mode = #tpu.pipeline_mode<synchronous>, transform_indices = @transform_2, window_bounds = array<i64: 1, 128>}, {pipeline_mode = #tpu.pipeline_mode<synchronous>, transform_indices = @transform_3, window_bounds = array<i64: 128, 128>}, {pipeline_mode = #tpu.pipeline_mode<synchronous>, transform_indices = @transform_4, window_bounds = array<i64: 1, 128>}, {transform_indices = @transform_5, window_bounds = array<i64: 2, 128>}]} {
    %c0_i32 = arith.constant 0 : i32
    %0 = arith.cmpi eq, %arg1, %c0_i32 : i32
    %1 = arith.extui %0 : i1 to i32
    %c0_i32_0 = arith.constant 0 : i32
    %2 = arith.cmpi ne, %1, %c0_i32_0 : i32
    scf.if %2 {
      %cst_9 = arith.constant 0.000000e+00 : f32
      %11 = vector.broadcast %cst_9 : f32 to vector<2x4xf32>
      %c0_10 = arith.constant 0 : index
      %c0_11 = arith.constant 0 : index
      %12 = vector.load %arg8[%c0_10, %c0_11] : memref<2x4xf32, #tpu.memory_space<vmem>>, vector<2x4xf32>
      tpu.vector_store %arg8[%c0_10, %c0_11], %11 {strides = array<i32>} : memref<2x4xf32, #tpu.memory_space<vmem>>, vector<2x4xf32>,
    } else {
    }
    %c0 = arith.constant 0 : index
    %c0_1 = arith.constant 0 : index
    %c0_2 = arith.constant 0 : index
    %3 = vector.load %arg2[%c0, %c0_1, %c0_2] : memref<2x4x256xf32, #tpu.memory_space<vmem>>, vector<2x4x256xf32>
    %c0_3 = arith.constant 0 : index
    %c0_4 = arith.constant 0 : index
    %4 = vector.load %arg8[%c0_3, %c0_4] : memref<2x4xf32, #tpu.memory_space<vmem>>, vector<2x4xf32>
    %cst = arith.constant dense<0.000000e+00> : vector<2x4xf32>
    %5 = vector.multi_reduction <add>, %3, %cst [2] : vector<2x4x256xf32> to vector<2x4xf32>
    %6 = arith.addf %4, %5 : vector<2x4xf32>
    %c0_5 = arith.constant 0 : index
    %c0_6 = arith.constant 0 : index
    %7 = vector.load %arg8[%c0_5, %c0_6] : memref<2x4xf32, #tpu.memory_space<vmem>>, vector<2x4xf32>
    tpu.vector_store %arg8[%c0_5, %c0_6], %6 {strides = array<i32>} : memref<2x4xf32, #tpu.memory_space<vmem>>, vector<2x4xf32>,
    %c0_i32_7 = arith.constant 0 : i32
    %8 = arith.cmpi eq, %arg1, %c0_i32_7 : i32
    %9 = arith.extui %8 : i1 to i32
    %c0_i32_8 = arith.constant 0 : i32
    %10 = arith.cmpi ne, %9, %c0_i32_8 : i32
    scf.if %10 {
      %c0_9 = arith.constant 0 : index
      %c0_10 = arith.constant 0 : index
      %11 = vector.load %arg8[%c0_9, %c0_10] : memref<2x4xf32, #tpu.memory_space<vmem>>, vector<2x4xf32>
      %cst_11 = arith.constant 3.906250e-03 : f32
      %12 = vector.broadcast %cst_11 : f32 to vector<2x4xf32>
      %13 = arith.mulf %11, %12 : vector<2x4xf32>
      %c0_12 = arith.constant 0 : index
      %c0_13 = arith.constant 0 : index
      %14 = vector.load %arg3[%c0_12, %c0_13] : memref<4x128xf32, #tpu.memory_space<vmem>>, vector<4x128xf32>
      %cst_14 = arith.constant dense<0.000000e+00> : vector<2x128xf32>
      %15 = tpu.matmul %13, %14, %cst_14 {dimension_numbers = #tpu.dot_dimension_numbers<[1], [0], [0], [1], [0, 0, 1, 1], [], []>} : vector<2x4xf32>, vector<4x128xf32>, vector<2x128xf32> -> vector<2x128xf32>
      %c0_15 = arith.constant 0 : index
      %c0_16 = arith.constant 0 : index
      %16 = vector.load %arg4[%c0_15, %c0_16] : memref<1x128xf32, #tpu.memory_space<vmem>>, vector<1x128xf32>
      %17 = vector.broadcast %16 : vector<1x128xf32> to vector<2x128xf32>
      %18 = arith.addf %15, %17 : vector<2x128xf32>
      %cst_17 = arith.constant 0.000000e+00 : f32
      %19 = vector.broadcast %cst_17 : f32 to vector<2x128xf32>
      %20 = arith.maximumf %18, %19 : vector<2x128xf32>
      %c0_18 = arith.constant 0 : index
      %c0_19 = arith.constant 0 : index
      %21 = vector.load %arg5[%c0_18, %c0_19] : memref<128x128xf32, #tpu.memory_space<vmem>>, vector<128x128xf32>
      %cst_20 = arith.constant dense<0.000000e+00> : vector<2x128xf32>
      %22 = tpu.matmul %20, %21, %cst_20 {dimension_numbers = #tpu.dot_dimension_numbers<[1], [0], [0], [1], [0, 0, 1, 1], [], []>} : vector<2x128xf32>, vector<128x128xf32>, vector<2x128xf32> -> vector<2x128xf32>
      %c0_21 = arith.constant 0 : index
      %c0_22 = arith.constant 0 : index
      %23 = vector.load %arg6[%c0_21, %c0_22] : memref<1x128xf32, #tpu.memory_space<vmem>>, vector<1x128xf32>
      %24 = vector.broadcast %23 : vector<1x128xf32> to vector<2x128xf32>
      %25 = arith.addf %22, %24 : vector<2x128xf32>
      %c0_23 = arith.constant 0 : index
      %c0_24 = arith.constant 0 : index
      %26 = vector.load %arg7[%c0_23, %c0_24] : memref<2x128xf32, #tpu.memory_space<vmem>>, vector<2x128xf32>
      tpu.vector_store %arg7[%c0_23, %c0_24], %25 {strides = array<i32>} : memref<2x128xf32, #tpu.memory_space<vmem>>, vector<2x128xf32>,
    } else {
    }
    return
  }
  func.func @transform_0(%arg0: i32, %arg1: i32) -> (i32, i32, i32) {
    %c0_i32 = arith.constant 0 : i32
    %c0_i32_0 = arith.constant 0 : i32
    return %arg0, %c0_i32, %arg1 : i32, i32, i32
  }
  func.func @transform_1(%arg0: i32, %arg1: i32) -> (i32, i32) {
    %c0_i32 = arith.constant 0 : i32
    %c0_i32_0 = arith.constant 0 : i32
    %c0_i32_1 = arith.constant 0 : i32
    return %c0_i32, %c0_i32_0 : i32, i32
  }
  func.func @transform_2(%arg0: i32, %arg1: i32) -> (i32, i32) {
    %c0_i32 = arith.constant 0 : i32
    %c0_i32_0 = arith.constant 0 : i32
    %c0_i32_1 = arith.constant 0 : i32
    return %c0_i32, %c0_i32_0 : i32, i32
  }
  func.func @transform_3(%arg0: i32, %arg1: i32) -> (i32, i32) {
    %c0_i32 = arith.constant 0 : i32
    %c0_i32_0 = arith.constant 0 : i32
    %c0_i32_1 = arith.constant 0 : i32
    return %c0_i32, %c0_i32_0 : i32, i32
  }
  func.func @transform_4(%arg0: i32, %arg1: i32) -> (i32, i32) {
    %c0_i32 = arith.constant 0 : i32
    %c0_i32_0 = arith.constant 0 : i32
    %c0_i32_1 = arith.constant 0 : i32
    return %c0_i32, %c0_i32_0 : i32, i32
  }
  func.func @transform_5(%arg0: i32, %arg1: i32) -> (i32, i32) {
    %c0_i32 = arith.constant 0 : i32
    %c0_i32_0 = arith.constant 0 : i32
    return %arg0, %c0_i32 : i32, i32
  }
}

</mosaic_0001>

<llo_original>
// kernel: tpu_custom_call.1
$region0: #{tpu_custom_call.1}
  #allocation0 [shape = 'u32[]', space=smem, size = 0x4, offset = 0x4, fixed_abs, tag = 'smem constant byte address 0x4 - core index']
  #allocation1 [shape = 'u32[72,128]{1,0:T(1,128)}', space=vmem, size = 0x9000, scoped, tag = 'internal scratch']
  #allocation2 [shape = 'f32[2,4]{1,0:T(2,128)}', space=vmem, size = 0x400, scoped, tag = 'scratch operand']
  %s0 = inlined_call_operand.hbm [shape: f32[2,4,256], index: 0, kind: input, shape index: {}]
  %s1 = inlined_call_operand.hbm [shape: f32[4,128], index: 1, kind: input, shape index: {}]
  %s2 = inlined_call_operand.vmem [shape: f32[1,128], index: 2, kind: input, shape index: {}]
  %s3 = inlined_call_operand.hbm [shape: f32[128,128], index: 3, kind: input, shape index: {}]
  %s4 = inlined_call_operand.vmem [shape: f32[1,128], index: 4, kind: input, shape index: {}]
  %s5 = inlined_call_operand.hbm [shape: f32[2,128], index: 5, kind: output, shape index: {}]
  %s6 = sld [smem:[#allocation0]]
  $region50: #{tpu_custom_call.1} parent=0
    _
  %s8 = ssub.s32 1, %s6
  %s9 = scalar_select 0, %s8, %s6
  $region1: #{tpu_custom_call.1} parent=0
    #allocation3 [shape = 'u8[8192]{0}', space=vmem, size = 0x2000, scoped, tag = 'input window, operand 0, single buffered']
    #allocation4 [shape = 's32[1]{0}', space=sflag, size = 0x4, scoped, tag = 'scoped memory for tpu_custom_call.1']
    #allocation5 [shape = 's32[1]{0}', space=sflag, size = 0x4, scoped, tag = 'scoped memory for tpu_custom_call.1']
    #allocation6 [shape = 'u8[2048]{0}', space=vmem, size = 0x800, scoped, tag = 'input window, operand 1, single buffered']
    #allocation7 [shape = 's32[1]{0}', space=sflag, size = 0x4, scoped, tag = 'scoped memory for tpu_custom_call.1']
    #allocation8 [shape = 'u8[65536]{0}', space=vmem, size = 0x10000, scoped, tag = 'input window, operand 3, single buffered']
    #allocation9 [shape = 'u8[1024]{0}', space=vmem, size = 0x400, scoped, tag = 'output window, operand 0, single buffered']
    %10 = vsyncpa [#allocation4], 0
    %11 = vsyncpa [#allocation7], 0
    %12 = vsyncpa [#allocation5], 0
    // Predicated region
    $region2: #{tpu_custom_call.1} parent=1 // pred_check
      _
    $region3: #{tpu_custom_call.1} parent=1 // pred_check_branch
      %14 = sbr.rel (0) target = $region5
    $region4: #{tpu_custom_call.1} parent=1 // pred_region
      %16 = vsyncadd [#allocation4], 0
      %s17 = sshll.u32 %s0, 4
      %s18 = int_to_ptr.hbm [resolvable:$true] %s17
      %s19 = sshll.u32 [#allocation3], 4
      %s20 = int_to_ptr.vmem [resolvable:$true] %s19
      %25 = dma.hbm_to_vmem [thread:$0]  %s18, 256, %s20, [#allocation4], 128, 128, 8
    $region5: #{tpu_custom_call.1} parent=1 // pred_fallthru
      _
    // Predicated region
    $region6: #{tpu_custom_call.1} parent=1 // pred_check
      _
    $region7: #{tpu_custom_call.1} parent=1 // pred_check_branch
      %27 = sbr.rel (0) target = $region9
    $region8: #{tpu_custom_call.1} parent=1 // pred_region
      %29 = vsyncadd [#allocation7], 0
      %s31 = sshll.u32 %s1, 4
      %s32 = int_to_ptr.hbm [resolvable:$true] %s31
      %s33 = sshll.u32 [#allocation6], 4
      %s34 = int_to_ptr.vmem [resolvable:$true] %s33
      %36 = dma.hbm_to_vmem [thread:$0]  %s32, 64, %s34, [#allocation7]
    $region9: #{tpu_custom_call.1} parent=1 // pred_fallthru
      _
    // Predicated region
    $region10: #{tpu_custom_call.1} parent=1 // pred_check
      _
    $region11: #{tpu_custom_call.1} parent=1 // pred_check_branch
      %38 = sbr.rel (0) target = $region13
    $region12: #{tpu_custom_call.1} parent=1 // pred_region
      _
    $region13: #{tpu_custom_call.1} parent=1 // pred_fallthru
      _
    // Predicated region
    $region14: #{tpu_custom_call.1} parent=1 // pred_check
      _
    $region15: #{tpu_custom_call.1} parent=1 // pred_check_branch
      %40 = sbr.rel (0) target = $region17
    $region16: #{tpu_custom_call.1} parent=1 // pred_region
      %42 = vsyncadd [#allocation7], 0
      %s43 = sshll.u32 %s3, 4
      %s44 = int_to_ptr.hbm [resolvable:$true] %s43
      %s45 = sshll.u32 [#allocation8], 4
      %s46 = int_to_ptr.vmem [resolvable:$true] %s45
      %51 = dma.hbm_to_vmem [thread:$0]  %s44, 2048, %s46, [#allocation7], 128, 128, 8
    $region17: #{tpu_custom_call.1} parent=1 // pred_fallthru
      _
    // Predicated region
    $region18: #{tpu_custom_call.1} parent=1 // pred_check
      _
    $region19: #{tpu_custom_call.1} parent=1 // pred_check_branch
      %53 = sbr.rel (0) target = $region21
    $region20: #{tpu_custom_call.1} parent=1 // pred_region
      _
    $region21: #{tpu_custom_call.1} parent=1 // pred_fallthru
      _
    // Predicated region
    $region22: #{tpu_custom_call.1} parent=1 // pred_check
      _
    $region23: #{tpu_custom_call.1} parent=1 // pred_check_branch
      %55 = sbr.rel (0) target = $region25
    $region24: #{tpu_custom_call.1} parent=1 // pred_region
      %57 = dma.done [#allocation4], 256
    $region25: #{tpu_custom_call.1} parent=1 // pred_fallthru
      _
    // Predicated region
    $region26: #{tpu_custom_call.1} parent=1 // pred_check
      _
    $region27: #{tpu_custom_call.1} parent=1 // pred_check_branch
      %59 = sbr.rel (0) target = $region29
    $region28: #{tpu_custom_call.1} parent=1 // pred_region
      %61 = dma.done [#allocation7], 64
    $region29: #{tpu_custom_call.1} parent=1 // pred_fallthru
      _
    // Predicated region
    $region30: #{tpu_custom_call.1} parent=1 // pred_check
      _
    $region31: #{tpu_custom_call.1} parent=1 // pred_check_branch
      %63 = sbr.rel (0) target = $region33
    $region32: #{tpu_custom_call.1} parent=1 // pred_region
      %65 = dma.done [#allocation7], 2048
    $region33: #{tpu_custom_call.1} parent=1 // pred_fallthru
      _
    %p66 = scmp.eq.s32.totalorder 0, 0
    // Predicated region
    $region34: #{tpu_custom_call.1} parent=1 // pred_check
      %p67 = pneg %p66
    $region35: #{tpu_custom_call.1} parent=1 // pred_check_branch
      %69 = sbr.rel (%p67) target = $region37
    $region36: #{tpu_custom_call.1} parent=1 // pred_region
      %vm70 = vcmask 25600
      %71 = vst.msk [vmem:[#allocation2] sm:$0x3] %vm70, 0.0
    $region37: #{tpu_custom_call.1} parent=1 // pred_fallthru
      _
    %v72 = vld [vmem:[#allocation3] sm:$0xff]
    %v73 = vld [vmem:[#allocation3 + $0x8] sm:$0xff]
    %v74 = vld [vmem:[#allocation2] sm:$0x3]
    %77 = vst [vmem:[#allocation1] ss:$2 sm:$0xff] %v72
    %v78 = vld.sshfl [vmem:[#allocation1] sm:$0xff pattern:$0x75316420]
    %v79 = vld.sshfl [vmem:[#allocation1 + $0x8] sm:$0xff pattern:$0x75316420]
    %s80 = scalar_lea.vmem [#allocation1], 16
    %81 = vst [vmem:[%s80] ss:$2 sm:$0xff] %v73
    %v82 = vld.sshfl [vmem:[#allocation1 + $0x10] sm:$0xff pattern:$0x75316420]
    %v83 = vld.sshfl [vmem:[#allocation1 + $0x18] sm:$0xff pattern:$0x75316420]
    %vm88 = vcmask 1043456
    %v89 = vsel %vm88, %v78, 0.0
    %v90 = vsel %vm88, %v79, 0.0
    %v91 = vadd.f32 %v89, %v90
    %92 = vadd.xlane.f32.xlu0 %v91
    %v93 = vpop.xlane.xlu0 %92
    %v94 = vsel %vm88, %v82, 0.0
    %v95 = vsel %vm88, %v83, 0.0
    %v96 = vadd.f32 %v94, %v95
    %97 = vadd.xlane.f32.xlu0 %v96
    %v98 = vpop.xlane.xlu0 %97
    %v101 = vlaneseq
    %v102 = vand.u32 %v101, 127
    %v103 = vperm.slane %v93, %v102
    %v104 = vperm.slane %v98, %v102
    %vm105 = vcmask 1041409
    %v106 = vsel %vm105, %v104, %v103
    %v108 = vadd.f32 %v74, %v106
    %vm109 = vcmask 25600
    %110 = vst.msk [vmem:[#allocation2] sm:$0x3] %vm109, %v108
    // Predicated region
    $region38: #{tpu_custom_call.1} parent=1 // pred_check
      %p111 = pneg %p66
    $region39: #{tpu_custom_call.1} parent=1 // pred_check_branch
      %113 = sbr.rel (%p111) target = $region41
    $region40: #{tpu_custom_call.1} parent=1 // pred_region
      %v114 = vld [vmem:[#allocation2] sm:$0x3]
      %v115 = vmul.f32 %v114, 0.00390625
      %v116 = vld [vmem:[#allocation6] sm:$0xf]
      %v117 = vld [vmem:[%s2] sm:$0x1]
      %v119 = vperm.slane %v117, 0
      %vm121 = vcmask 31744
      %v123 = vsel %vm121, %v115, 0
      %v126 = vsel %vm88, %v116, 0
      %128 = vmatpush.msra.mxu0 0.0
      %129 = vmatpush.msra.mxu0 0.0
      %130 = vmatpush.msra.mxu0 0.0
      %131 = vmatpush.msra.mxu0 0.0
      %132 = vmatpush.msra.mxu0 0.0
      %133 = vmatpush.msra.mxu0 0.0
      %134 = vmatpush.msra.mxu0 0.0
      %135 = vmatpush.msra.mxu0 0.0
      %136 = vmatpush.msra.mxu0 0.0
      %137 = vmatpush.msra.mxu0 0.0
      %138 = vmatpush.msra.mxu0 0.0
      %139 = vmatpush.msra.mxu0 0.0
      %140 = vmatpush.msra.mxu0 0.0
      %141 = vmatpush.msra.mxu0 0.0
      %142 = vmatpush.msra.mxu0 0.0
      %143 = vmatpush.msra.mxu0 %v126
      %144 = vmatmul.f32.gmra.mxu0 %v123
      %v145 = vpop.f32.mrf.mxu0
      %v146 = vadd.f32 %v119, %v145
      %147 = vdwg.mxu0
      %v148 = vmax.f32 %v146, 0.0
      %v149 = vld [vmem:[#allocation8] sm:$0xff]
      %v150 = vld [vmem:[#allocation8 + $0x8] sm:$0xff]
      %v151 = vld [vmem:[#allocation8 + $0x10] sm:$0xff]
      %v152 = vld [vmem:[#allocation8 + $0x18] sm:$0xff]
      %v153 = vld [vmem:[#allocation8 + $0x20] sm:$0xff]
      %v154 = vld [vmem:[#allocation8 + $0x28] sm:$0xff]
      %v155 = vld [vmem:[#allocation8 + $0x30] sm:$0xff]
      %v156 = vld [vmem:[#allocation8 + $0x38] sm:$0xff]
      %v157 = vld [vmem:[#allocation8 + $0x40] sm:$0xff]
      %v158 = vld [vmem:[#allocation8 + $0x48] sm:$0xff]
      %v159 = vld [vmem:[#allocation8 + $0x50] sm:$0xff]
      %v160 = vld [vmem:[#allocation8 + $0x58] sm:$0xff]
      %v161 = vld [vmem:[#allocation8 + $0x60] sm:$0xff]
      %v162 = vld [vmem:[#allocation8 + $0x68] sm:$0xff]
      %v163 = vld [vmem:[#allocation8 + $0x70] sm:$0xff]
      %v164 = vld [vmem:[#allocation8 + $0x78] sm:$0xff]
      %v165 = vld [vmem:[%s4] sm:$0x1]
      %v167 = vperm.slane %v165, 0
      %169 = vmatpush.msra.mxu0 %v164
      %170 = vmatpush.msra.mxu0 %v163
      %171 = vmatpush.msra.mxu0 %v162
      %172 = vmatpush.msra.mxu0 %v161
      %173 = vmatpush.msra.mxu0 %v160
      %174 = vmatpush.msra.mxu0 %v159
      %175 = vmatpush.msra.mxu0 %v158
      %176 = vmatpush.msra.mxu0 %v157
      %177 = vmatpush.msra.mxu0 %v156
      %178 = vmatpush.msra.mxu0 %v155
      %179 = vmatpush.msra.mxu0 %v154
      %180 = vmatpush.msra.mxu0 %v153
      %181 = vmatpush.msra.mxu0 %v152
      %182 = vmatpush.msra.mxu0 %v151
      %183 = vmatpush.msra.mxu0 %v150
      %184 = vmatpush.msra.mxu0 %v149
      %185 = vmatmul.f32.gmra.mxu0 %v148
      %v186 = vpop.f32.mrf.mxu0
      %v187 = vadd.f32 %v167, %v186
      %188 = vdwg.mxu0
      %189 = vst [vmem:[#allocation9] sm:$0x3] %v187
    $region41: #{tpu_custom_call.1} parent=1 // pred_fallthru
      _
    // Predicated region
    $region42: #{tpu_custom_call.1} parent=1 // pred_check
      _
    $region43: #{tpu_custom_call.1} parent=1 // pred_check_branch
      %191 = sbr.rel (0) target = $region45
    $region44: #{tpu_custom_call.1} parent=1 // pred_region
      %193 = vsyncadd [#allocation5], 0
      %s195 = sshll.u32 [#allocation9], 4
      %s196 = int_to_ptr.vmem [resolvable:$true] %s195
      %s197 = sshll.u32 %s5, 4
      %s198 = int_to_ptr.hbm [resolvable:$true] %s197
      %200 = dma.vmem_to_hbm [thread:$0]  %s196, 32, %s198, [#allocation5]
    $region45: #{tpu_custom_call.1} parent=1 // pred_fallthru
      _
    // Predicated region
    $region46: #{tpu_custom_call.1} parent=1 // pred_check
      _
    $region47: #{tpu_custom_call.1} parent=1 // pred_check_branch
      %202 = sbr.rel (0) target = $region49
    $region48: #{tpu_custom_call.1} parent=1 // pred_region
      %204 = dma.done [#allocation5], 32
    $region49: #{tpu_custom_call.1} parent=1 // pred_fallthru
      _
    %205 = vsyncpa [#allocation4], 1
    %206 = vsyncpa [#allocation7], 1
    %207 = vsyncpa [#allocation5], 1

</llo_original>
